<compile_context>
chip_gen: v5e
topology: v5e:2x2
jax: 0.10.0
libtpu: 0.0.40
codegen_flags: <defaults>
</compile_context>

<pallas_src>
import jax
import jax.numpy as jnp
from jax.experimental import pallas as pl
from jax.experimental.pallas import tpu as pltpu


def _round_up(x, m):
    return ((x + m - 1) // m) * m


def _mlp_kernel(x_ref, w1_ref, b1_ref, w2_ref, b2_ref, w3_ref, b3_ref, out_ref):
    """One batch tile: 3-layer MLP (Linear->ReLU->Linear->ReLU->Linear) followed
    by the log-softmax normalization Categorical(logits=...) performs.
    Everything is f32; weights/biases are VMEM-resident across the grid."""
    h = jnp.dot(x_ref[...], w1_ref[...], preferred_element_type=jnp.float32) + b1_ref[...]
    h = jnp.maximum(h, 0.0)

    h = jnp.dot(h, w2_ref[...], preferred_element_type=jnp.float32) + b2_ref[...]
    h = jnp.maximum(h, 0.0)

    logits = jnp.dot(h, w3_ref[...], preferred_element_type=jnp.float32) + b3_ref[...]

    # Categorical(logits=logits) internals: normalized logits (log-probs).
    shifted = logits - jnp.max(logits, axis=-1, keepdims=True)
    out_ref[...] = shifted - jnp.log(jnp.sum(jnp.exp(shifted), axis=-1, keepdims=True))


def categorical_mlp_policy_forward(x, params, *, block_b=1024):
    """params: dict of layer{i}.weight ([out, in]) / layer{i}.bias ([out]) with
    exactly the PyTorch module's parameter shapes.  Returns (norm_logits,
    probs): the tensors that define Categorical(logits=logits)."""
    B, in_size = x.shape
    h1 = params["layer1.weight"].shape[0]
    h2 = params["layer2.weight"].shape[0]
    out_size = params["layer3.weight"].shape[0]

    # Glue: pre-transpose weights to [in, out]; biases as [1, out] rows. All f32.
    w1 = params["layer1.weight"].T.astype(jnp.float32)
    w2 = params["layer2.weight"].T.astype(jnp.float32)
    w3 = params["layer3.weight"].T.astype(jnp.float32)
    b1 = params["layer1.bias"].reshape(1, h1).astype(jnp.float32)
    b2 = params["layer2.bias"].reshape(1, h2).astype(jnp.float32)
    b3 = params["layer3.bias"].reshape(1, out_size).astype(jnp.float32)

    # Batch tile: as large as block_b (per-step overhead dominates the tiny
    # per-tile work), but sized so modest batches still produce >= 2 grid
    # steps (so the "parallel" axis can shard across v7x's 2 TensorCores).
    # Multiple of 8 sublanes; Pallas masks the partial last block, so no
    # wrapper pad/slice is needed.
    tb = min(block_b, max(8, _round_up(pl.cdiv(B, 2), 8)))
    grid = (pl.cdiv(B, tb),)

    resident = lambda i: (0, 0)   # weights / biases: same block every grid step
    tiled = lambda i: (i, 0)      # x / output: tiled over the batch

    cost = pl.CostEstimate(
        flops=2 * B * (in_size * h1 + h1 * h2 + h2 * out_size),
        transcendentals=B * (out_size + 1),          # exp per element + log per row
        bytes_accessed=4 * (B * (in_size + out_size)
                            + in_size * h1 + h1 * h2 + h2 * out_size
                            + h1 + h2 + out_size),
    )

    norm_logits = pl.pallas_call(
        _mlp_kernel,
        out_shape=jax.ShapeDtypeStruct((B, out_size), jnp.float32),
        grid=grid,
        in_specs=[
            pl.BlockSpec((tb, in_size), tiled),
            pl.BlockSpec((in_size, h1), resident),
            pl.BlockSpec((1, h1), resident),
            pl.BlockSpec((h1, h2), resident),
            pl.BlockSpec((1, h2), resident),
            pl.BlockSpec((h2, out_size), resident),
            pl.BlockSpec((1, out_size), resident),
        ],
        out_specs=pl.BlockSpec((tb, out_size), tiled),
        compiler_params=pltpu.CompilerParams(
            dimension_semantics=("parallel",),   # shards batch tiles across TCs on v7x
        ),
        cost_estimate=cost,
    )(x.astype(jnp.float32), w1, b1, w2, b2, w3, b3)

    # Exact by construction: rows of probs sum to 1 (up to f32 exp rounding).
    probs = jnp.exp(norm_logits)
    return norm_logits, probs


def init_params(key, input_size, hidden_sizes, output_size):
    """xavier_uniform weights + zero biases (matches weight_init)."""
    layer_sizes = (input_size,) + tuple(hidden_sizes) + (output_size,)
    params = {}
    for i in range(1, len(layer_sizes)):
        fan_in, fan_out = layer_sizes[i - 1], layer_sizes[i]
        key, sub = jax.random.split(key)
        limit = (6.0 / (fan_in + fan_out)) ** 0.5
        # PyTorch nn.Linear weight shape: [out, in]
        w = jax.random.uniform(sub, (fan_out, fan_in), jnp.float32, -limit, limit)
        params[f"layer{i}.weight"] = w
        params[f"layer{i}.bias"] = jnp.zeros((fan_out,), jnp.float32)
    return params


def _reference_forward(x, params):
    """Pure f32 JAX reference of the PyTorch forward + Categorical internals."""
    hp = jax.lax.Precision.HIGHEST
    h = x
    for i in (1, 2):
        h = jnp.dot(h, params[f"layer{i}.weight"].T, precision=hp) + params[f"layer{i}.bias"]
        h = jnp.maximum(h, 0.0)
    logits = jnp.dot(h, params["layer3.weight"].T, precision=hp) + params["layer3.bias"]
    norm = logits - jax.scipy.special.logsumexp(logits, axis=-1, keepdims=True)
    return norm, jnp.exp(norm)


if __name__ == "__main__":
    # Make the in-kernel dots and the XLA reference use full-f32 MXU passes so
    # they are directly comparable.
    jax.config.update("jax_default_matmul_precision", "highest")

    input_size, hidden_sizes, output_size = 16, (32, 32), 8

    key = jax.random.PRNGKey(0)
    k_x, k_x2, k_p = jax.random.split(key, 3)
    params = init_params(k_p, input_size, hidden_sizes, output_size)

    fwd = jax.jit(categorical_mlp_policy_forward)

    ATOL = RTOL = 1e-3   # f32 end-to-end

    # Small batch (single tile).
    x = jax.random.normal(k_x, (8, input_size), jnp.float32)
    norm_logits, probs = jax.block_until_ready(fwd(x, params))
    ref_norm, ref_probs = _reference_forward(x, params)
    assert norm_logits.shape == (8, output_size)
    assert jnp.allclose(norm_logits, ref_norm, atol=ATOL, rtol=RTOL)
    assert jnp.allclose(probs, ref_probs, atol=ATOL, rtol=RTOL)
    assert jnp.allclose(jnp.sum(probs, axis=-1), 1.0, atol=1e-5)

    # Larger, non-tile-multiple batch: exercises the 2-step grid and the
    # masked partial last block (no wrapper padding involved).
    x2 = jax.random.normal(k_x2, (300, input_size), jnp.float32)
    norm2, probs2 = jax.block_until_ready(fwd(x2, params))
    ref_norm2, ref_probs2 = _reference_forward(x2, params)
    assert norm2.shape == (300, output_size)
    assert jnp.allclose(norm2, ref_norm2, atol=ATOL, rtol=RTOL)
    assert jnp.allclose(probs2, ref_probs2, atol=ATOL, rtol=RTOL)
    assert jnp.allclose(jnp.sum(probs2, axis=-1), 1.0, atol=1e-5)

    # TODO(synk): Categorical's sampling / entropy / log_prob API and
    # Policy.update_params (autograd) are outside the forward hot path and are
    # not implemented in the kernel; (norm_logits, probs) fully define the
    # returned distribution.
    print("KERNEL_OK")
</pallas_src>

<mosaic_0001>
module attributes {stable_mosaic.version = 11 : i64} {
  func.func @_mlp_kernel(%arg0: i32, %arg1: memref<8x16xf32, #tpu.memory_space<vmem>>, %arg2: memref<16x32xf32, #tpu.memory_space<vmem>>, %arg3: memref<1x32xf32, #tpu.memory_space<vmem>>, %arg4: memref<32x32xf32, #tpu.memory_space<vmem>>, %arg5: memref<1x32xf32, #tpu.memory_space<vmem>>, %arg6: memref<32x8xf32, #tpu.memory_space<vmem>>, %arg7: memref<1x8xf32, #tpu.memory_space<vmem>>, %arg8: memref<8x8xf32, #tpu.memory_space<vmem>>) attributes {dimension_semantics = [#tpu.dimension_semantics<parallel>], iteration_bounds = array<i64: 1>, scalar_prefetch = 0 : i64, scratch_operands = 0 : i64, tpu.core_type = #tpu.core_type<tc>, window_params = [{transform_indices = @transform_0, window_bounds = array<i64: 8, 16>}, {pipeline_mode = #tpu.pipeline_mode<synchronous>, transform_indices = @transform_1, window_bounds = array<i64: 16, 32>}, {pipeline_mode = #tpu.pipeline_mode<synchronous>, transform_indices = @transform_2, window_bounds = array<i64: 1, 32>}, {pipeline_mode = #tpu.pipeline_mode<synchronous>, transform_indices = @transform_3, window_bounds = array<i64: 32, 32>}, {pipeline_mode = #tpu.pipeline_mode<synchronous>, transform_indices = @transform_4, window_bounds = array<i64: 1, 32>}, {pipeline_mode = #tpu.pipeline_mode<synchronous>, transform_indices = @transform_5, window_bounds = array<i64: 32, 8>}, {pipeline_mode = #tpu.pipeline_mode<synchronous>, transform_indices = @transform_6, window_bounds = array<i64: 1, 8>}, {transform_indices = @transform_7, window_bounds = array<i64: 8, 8>}]} {
    %c0 = arith.constant 0 : index
    %c0_0 = arith.constant 0 : index
    %0 = vector.load %arg1[%c0, %c0_0] : memref<8x16xf32, #tpu.memory_space<vmem>>, vector<8x16xf32>
    %c0_1 = arith.constant 0 : index
    %c0_2 = arith.constant 0 : index
    %1 = vector.load %arg2[%c0_1, %c0_2] : memref<16x32xf32, #tpu.memory_space<vmem>>, vector<16x32xf32>
    %cst = arith.constant dense<0.000000e+00> : vector<8x32xf32>
    %2 = tpu.matmul %0, %1, %cst {dimension_numbers = #tpu.dot_dimension_numbers<[1], [0], [0], [1], [0, 0, 1, 1], [], []>, precision = #tpu.contract_precision<fp32>} : vector<8x16xf32>, vector<16x32xf32>, vector<8x32xf32> -> vector<8x32xf32>
    %c0_3 = arith.constant 0 : index
    %c0_4 = arith.constant 0 : index
    %3 = vector.load %arg3[%c0_3, %c0_4] : memref<1x32xf32, #tpu.memory_space<vmem>>, vector<1x32xf32>
    %4 = vector.broadcast %3 : vector<1x32xf32> to vector<8x32xf32>
    %5 = arith.addf %2, %4 : vector<8x32xf32>
    %cst_5 = arith.constant 0.000000e+00 : f32
    %6 = vector.broadcast %cst_5 : f32 to vector<8x32xf32>
    %7 = arith.maximumf %5, %6 : vector<8x32xf32>
    %c0_6 = arith.constant 0 : index
    %c0_7 = arith.constant 0 : index
    %8 = vector.load %arg4[%c0_6, %c0_7] : memref<32x32xf32, #tpu.memory_space<vmem>>, vector<32x32xf32>
    %cst_8 = arith.constant dense<0.000000e+00> : vector<8x32xf32>
    %9 = tpu.matmul %7, %8, %cst_8 {dimension_numbers = #tpu.dot_dimension_numbers<[1], [0], [0], [1], [0, 0, 1, 1], [], []>, precision = #tpu.contract_precision<fp32>} : vector<8x32xf32>, vector<32x32xf32>, vector<8x32xf32> -> vector<8x32xf32>
    %c0_9 = arith.constant 0 : index
    %c0_10 = arith.constant 0 : index
    %10 = vector.load %arg5[%c0_9, %c0_10] : memref<1x32xf32, #tpu.memory_space<vmem>>, vector<1x32xf32>
    %11 = vector.broadcast %10 : vector<1x32xf32> to vector<8x32xf32>
    %12 = arith.addf %9, %11 : vector<8x32xf32>
    %cst_11 = arith.constant 0.000000e+00 : f32
    %13 = vector.broadcast %cst_11 : f32 to vector<8x32xf32>
    %14 = arith.maximumf %12, %13 : vector<8x32xf32>
    %c0_12 = arith.constant 0 : index
    %c0_13 = arith.constant 0 : index
    %15 = vector.load %arg6[%c0_12, %c0_13] : memref<32x8xf32, #tpu.memory_space<vmem>>, vector<32x8xf32>
    %cst_14 = arith.constant dense<0.000000e+00> : vector<8x8xf32>
    %16 = tpu.matmul %14, %15, %cst_14 {dimension_numbers = #tpu.dot_dimension_numbers<[1], [0], [0], [1], [0, 0, 1, 1], [], []>, precision = #tpu.contract_precision<fp32>} : vector<8x32xf32>, vector<32x8xf32>, vector<8x8xf32> -> vector<8x8xf32>
    %c0_15 = arith.constant 0 : index
    %c0_16 = arith.constant 0 : index
    %17 = vector.load %arg7[%c0_15, %c0_16] : memref<1x8xf32, #tpu.memory_space<vmem>>, vector<1x8xf32>
    %18 = vector.broadcast %17 : vector<1x8xf32> to vector<8x8xf32>
    %19 = arith.addf %16, %18 : vector<8x8xf32>
    %cst_17 = arith.constant dense<0xFF800000> : vector<8xf32>
    %20 = vector.multi_reduction <maximumf>, %19, %cst_17 [1] : vector<8x8xf32> to vector<8xf32>
    %21 = vector.shape_cast %20 : vector<8xf32> to vector<8x1xf32>
    %22 = vector.broadcast %21 : vector<8x1xf32> to vector<8x8xf32>
    %23 = arith.subf %19, %22 : vector<8x8xf32>
    %24 = math.exp %23 : vector<8x8xf32>
    %cst_18 = arith.constant dense<0.000000e+00> : vector<8xf32>
    %25 = vector.multi_reduction <add>, %24, %cst_18 [1] : vector<8x8xf32> to vector<8xf32>
    %26 = vector.shape_cast %25 : vector<8xf32> to vector<8x1xf32>
    %27 = math.log %26 : vector<8x1xf32>
    %28 = vector.broadcast %27 : vector<8x1xf32> to vector<8x8xf32>
    %29 = arith.subf %23, %28 : vector<8x8xf32>
    %c0_19 = arith.constant 0 : index
    %c0_20 = arith.constant 0 : index
    %30 = vector.load %arg8[%c0_19, %c0_20] : memref<8x8xf32, #tpu.memory_space<vmem>>, vector<8x8xf32>
    tpu.vector_store %arg8[%c0_19, %c0_20], %29 {strides = array<i32>} : memref<8x8xf32, #tpu.memory_space<vmem>>, vector<8x8xf32>,
    return
  }
  func.func @transform_0(%arg0: i32) -> (i32, i32) {
    %c0_i32 = arith.constant 0 : i32
    %c0_i32_0 = arith.constant 0 : i32
    return %arg0, %c0_i32 : i32, i32
  }
  func.func @transform_1(%arg0: i32) -> (i32, i32) {
    %c0_i32 = arith.constant 0 : i32
    %c0_i32_0 = arith.constant 0 : i32
    %c0_i32_1 = arith.constant 0 : i32
    return %c0_i32, %c0_i32_0 : i32, i32
  }
  func.func @transform_2(%arg0: i32) -> (i32, i32) {
    %c0_i32 = arith.constant 0 : i32
    %c0_i32_0 = arith.constant 0 : i32
    %c0_i32_1 = arith.constant 0 : i32
    return %c0_i32, %c0_i32_0 : i32, i32
  }
  func.func @transform_3(%arg0: i32) -> (i32, i32) {
    %c0_i32 = arith.constant 0 : i32
    %c0_i32_0 = arith.constant 0 : i32
    %c0_i32_1 = arith.constant 0 : i32
    return %c0_i32, %c0_i32_0 : i32, i32
  }
  func.func @transform_4(%arg0: i32) -> (i32, i32) {
    %c0_i32 = arith.constant 0 : i32
    %c0_i32_0 = arith.constant 0 : i32
    %c0_i32_1 = arith.constant 0 : i32
    return %c0_i32, %c0_i32_0 : i32, i32
  }
  func.func @transform_5(%arg0: i32) -> (i32, i32) {
    %c0_i32 = arith.constant 0 : i32
    %c0_i32_0 = arith.constant 0 : i32
    %c0_i32_1 = arith.constant 0 : i32
    return %c0_i32, %c0_i32_0 : i32, i32
  }
  func.func @transform_6(%arg0: i32) -> (i32, i32) {
    %c0_i32 = arith.constant 0 : i32
    %c0_i32_0 = arith.constant 0 : i32
    %c0_i32_1 = arith.constant 0 : i32
    return %c0_i32, %c0_i32_0 : i32, i32
  }
  func.func @transform_7(%arg0: i32) -> (i32, i32) {
    %c0_i32 = arith.constant 0 : i32
    %c0_i32_0 = arith.constant 0 : i32
    return %arg0, %c0_i32 : i32, i32
  }
}

</mosaic_0001>

<llo_original>
// kernel: categorical_mlp_policy_forward.1
$region0: #{categorical_mlp_policy_forward.1}
  #allocation0 [shape = 'u32[]', space=smem, size = 0x4, offset = 0x4, fixed_abs, tag = 'smem constant byte address 0x4 - core index']
  #allocation1 [shape = 'u32[72,128]{1,0:T(1,128)}', space=vmem, size = 0x9000, scoped, tag = 'internal scratch']
  %s0 = inlined_call_operand.vmem [shape: f32[8,16], index: 0, kind: input, shape index: {}]
  %s1 = inlined_call_operand.vmem [shape: f32[16,32], index: 1, kind: input, shape index: {}]
  %s2 = inlined_call_operand.vmem [shape: f32[1,32], index: 2, kind: input, shape index: {}]
  %s3 = inlined_call_operand.vmem [shape: f32[32,32], index: 3, kind: input, shape index: {}]
  %s4 = inlined_call_operand.vmem [shape: f32[1,32], index: 4, kind: input, shape index: {}]
  %s5 = inlined_call_operand.vmem [shape: f32[32,8], index: 5, kind: input, shape index: {}]
  %s6 = inlined_call_operand.vmem [shape: f32[1,8], index: 6, kind: input, shape index: {}]
  %s7 = inlined_call_operand.vmem [shape: f32[8,8], index: 7, kind: output, shape index: {}]
  %s8 = sld [smem:[#allocation0]]
  $region38: #{categorical_mlp_policy_forward.1} parent=0
    _
  %s10 = ssub.s32 1, %s8
  %s11 = scalar_select 0, %s10, %s8
  // Predicated region
  $region2: #{categorical_mlp_policy_forward.1} parent=0 // pred_check
    _
  $region3: #{categorical_mlp_policy_forward.1} parent=0 // pred_check_branch
    %13 = sbr.rel (0) target = $region5
  $region4: #{categorical_mlp_policy_forward.1} parent=0 // pred_region
    _
  $region5: #{categorical_mlp_policy_forward.1} parent=0 // pred_fallthru
    _
  // Predicated region
  $region6: #{categorical_mlp_policy_forward.1} parent=0 // pred_check
    _
  $region7: #{categorical_mlp_policy_forward.1} parent=0 // pred_check_branch
    %15 = sbr.rel (0) target = $region9
  $region8: #{categorical_mlp_policy_forward.1} parent=0 // pred_region
    _
  $region9: #{categorical_mlp_policy_forward.1} parent=0 // pred_fallthru
    _
  // Predicated region
  $region10: #{categorical_mlp_policy_forward.1} parent=0 // pred_check
    _
  $region11: #{categorical_mlp_policy_forward.1} parent=0 // pred_check_branch
    %17 = sbr.rel (0) target = $region13
  $region12: #{categorical_mlp_policy_forward.1} parent=0 // pred_region
    _
  $region13: #{categorical_mlp_policy_forward.1} parent=0 // pred_fallthru
    _
  // Predicated region
  $region14: #{categorical_mlp_policy_forward.1} parent=0 // pred_check
    _
  $region15: #{categorical_mlp_policy_forward.1} parent=0 // pred_check_branch
    %19 = sbr.rel (0) target = $region17
  $region16: #{categorical_mlp_policy_forward.1} parent=0 // pred_region
    _
  $region17: #{categorical_mlp_policy_forward.1} parent=0 // pred_fallthru
    _
  // Predicated region
  $region18: #{categorical_mlp_policy_forward.1} parent=0 // pred_check
    _
  $region19: #{categorical_mlp_policy_forward.1} parent=0 // pred_check_branch
    %21 = sbr.rel (0) target = $region21
  $region20: #{categorical_mlp_policy_forward.1} parent=0 // pred_region
    _
  $region21: #{categorical_mlp_policy_forward.1} parent=0 // pred_fallthru
    _
  // Predicated region
  $region22: #{categorical_mlp_policy_forward.1} parent=0 // pred_check
    _
  $region23: #{categorical_mlp_policy_forward.1} parent=0 // pred_check_branch
    %23 = sbr.rel (0) target = $region25
  $region24: #{categorical_mlp_policy_forward.1} parent=0 // pred_region
    _
  $region25: #{categorical_mlp_policy_forward.1} parent=0 // pred_fallthru
    _
  // Predicated region
  $region26: #{categorical_mlp_policy_forward.1} parent=0 // pred_check
    _
  $region27: #{categorical_mlp_policy_forward.1} parent=0 // pred_check_branch
    %25 = sbr.rel (0) target = $region29
  $region28: #{categorical_mlp_policy_forward.1} parent=0 // pred_region
    _
  $region29: #{categorical_mlp_policy_forward.1} parent=0 // pred_fallthru
    _
  %v26 = vld [vmem:[%s0] sm:$0xff]
  %v27 = vld [vmem:[%s1] sm:$0xff]
  %v28 = vld [vmem:[%s1 + $0x8] sm:$0xff]
  %v29 = vld [vmem:[%s2] sm:$0x1]
  %v31 = vperm.slane %v29, 0
  %vm33 = vcmask 130048
  %v35 = vsel %vm33, %v26, 0
  %37 = vmatpush.msra.mxu0 0.0
  %38 = vmatpush.msra.mxu0 0.0
  %39 = vmatpush.msra.mxu0 0.0
  %40 = vmatpush.msra.mxu0 0.0
  %41 = vmatpush.msra.mxu0 0.0
  %42 = vmatpush.msra.mxu0 0.0
  %43 = vmatpush.msra.mxu0 0.0
  %44 = vmatpush.msra.mxu0 0.0
  %45 = vmatpush.msra.mxu0 0.0
  %46 = vmatpush.msra.mxu0 0.0
  %47 = vmatpush.msra.mxu0 0.0
  %48 = vmatpush.msra.mxu0 0.0
  %49 = vmatpush.msra.mxu0 0.0
  %50 = vmatpush.msra.mxu0 0.0
  %v51 = vand.u32 %v28, 4294901760
  %52 = vmatpush.msra.mxu0 %v51
  %v53 = vand.u32 %v27, 4294901760
  %54 = vmatpush.msra.mxu0 %v53
  %v55 = vand.u32 %v35, 4294901760
  %v56 = vsub.f32 %v35, %v55
  %v57 = vand.u32 %v56, 4294901760
  %v58 = vsub.f32 %v56, %v57
  %v59 = vand.u32 %v58, 4294901760
  %60 = vmatmul.f32.gmra.mxu0 %v59
  %v61 = vpop.f32.mrf.mxu0
  %v62 = vadd.f32 %v31, %v61
  %63 = vdwg.mxu0
  %64 = vmatpush.msra.mxu0 0.0
  %65 = vmatpush.msra.mxu0 0.0
  %66 = vmatpush.msra.mxu0 0.0
  %67 = vmatpush.msra.mxu0 0.0
  %68 = vmatpush.msra.mxu0 0.0
  %69 = vmatpush.msra.mxu0 0.0
  %70 = vmatpush.msra.mxu0 0.0
  %71 = vmatpush.msra.mxu0 0.0
  %72 = vmatpush.msra.mxu0 0.0
  %73 = vmatpush.msra.mxu0 0.0
  %74 = vmatpush.msra.mxu0 0.0
  %75 = vmatpush.msra.mxu0 0.0
  %76 = vmatpush.msra.mxu0 0.0
  %77 = vmatpush.msra.mxu0 0.0
  %v78 = vand.u32 %v28, 4294901760
  %v79 = vsub.f32 %v28, %v78
  %v80 = vand.u32 %v79, 4294901760
  %v81 = vsub.f32 %v79, %v80
  %v82 = vand.u32 %v81, 4294901760
  %83 = vmatpush.msra.mxu0 %v82
  %v84 = vand.u32 %v27, 4294901760
  %v85 = vsub.f32 %v27, %v84
  %v86 = vand.u32 %v85, 4294901760
  %v87 = vsub.f32 %v85, %v86
  %v88 = vand.u32 %v87, 4294901760
  %89 = vmatpush.msra.mxu0 %v88
  %v90 = vand.u32 %v35, 4294901760
  %91 = vmatmul.f32.gmra.mxu0 %v90
  %v92 = vpop.f32.mrf.mxu0
  %v93 = vadd.f32 %v62, %v92
  %94 = vdwg.mxu0
  %95 = vmatpush.msra.mxu0 0.0
  %96 = vmatpush.msra.mxu0 0.0
  %97 = vmatpush.msra.mxu0 0.0
  %98 = vmatpush.msra.mxu0 0.0
  %99 = vmatpush.msra.mxu0 0.0
  %100 = vmatpush.msra.mxu0 0.0
  %101 = vmatpush.msra.mxu0 0.0
  %102 = vmatpush.msra.mxu0 0.0
  %103 = vmatpush.msra.mxu0 0.0
  %104 = vmatpush.msra.mxu0 0.0
  %105 = vmatpush.msra.mxu0 0.0
  %106 = vmatpush.msra.mxu0 0.0
  %107 = vmatpush.msra.mxu0 0.0
  %108 = vmatpush.msra.mxu0 0.0
  %v109 = vand.u32 %v28, 4294901760
  %v110 = vsub.f32 %v28, %v109
  %111 = vmatpush.msra.mxu0 %v110
  %v112 = vand.u32 %v27, 4294901760
  %v113 = vsub.f32 %v27, %v112
  %114 = vmatpush.msra.mxu0 %v113
  %v115 = vand.u32 %v35, 4294901760
  %v116 = vsub.f32 %v35, %v115
  %117 = vmatmul.f32.gmra.mxu0 %v116
  %v118 = vpop.f32.mrf.mxu0
  %v119 = vadd.f32 %v93, %v118
  %120 = vdwg.mxu0
  %121 = vmatpush.msra.mxu0 0.0
  %122 = vmatpush.msra.mxu0 0.0
  %123 = vmatpush.msra.mxu0 0.0
  %124 = vmatpush.msra.mxu0 0.0
  %125 = vmatpush.msra.mxu0 0.0
  %126 = vmatpush.msra.mxu0 0.0
  %127 = vmatpush.msra.mxu0 0.0
  %128 = vmatpush.msra.mxu0 0.0
  %129 = vmatpush.msra.mxu0 0.0
  %130 = vmatpush.msra.mxu0 0.0
  %131 = vmatpush.msra.mxu0 0.0
  %132 = vmatpush.msra.mxu0 0.0
  %133 = vmatpush.msra.mxu0 0.0
  %134 = vmatpush.msra.mxu0 0.0
  %v135 = vand.u32 %v28, 4294901760
  %136 = vmatpush.msra.mxu0 %v135
  %v137 = vand.u32 %v27, 4294901760
  %138 = vmatpush.msra.mxu0 %v137
  %v139 = vand.u32 %v35, 4294901760
  %v140 = vsub.f32 %v35, %v139
  %v141 = vand.u32 %v140, 4294901760
  %142 = vmatmul.f32.gmra.mxu0 %v141
  %v143 = vpop.f32.mrf.mxu0
  %v144 = vadd.f32 %v119, %v143
  %145 = vdwg.mxu0
  %146 = vmatpush.msra.mxu0 0.0
  %147 = vmatpush.msra.mxu0 0.0
  %148 = vmatpush.msra.mxu0 0.0
  %149 = vmatpush.msra.mxu0 0.0
  %150 = vmatpush.msra.mxu0 0.0
  %151 = vmatpush.msra.mxu0 0.0
  %152 = vmatpush.msra.mxu0 0.0
  %153 = vmatpush.msra.mxu0 0.0
  %154 = vmatpush.msra.mxu0 0.0
  %155 = vmatpush.msra.mxu0 0.0
  %156 = vmatpush.msra.mxu0 0.0
  %157 = vmatpush.msra.mxu0 0.0
  %158 = vmatpush.msra.mxu0 0.0
  %159 = vmatpush.msra.mxu0 0.0
  %v160 = vand.u32 %v28, 4294901760
  %v161 = vsub.f32 %v28, %v160
  %v162 = vand.u32 %v161, 4294901760
  %163 = vmatpush.msra.mxu0 %v162
  %v164 = vand.u32 %v27, 4294901760
  %v165 = vsub.f32 %v27, %v164
  %v166 = vand.u32 %v165, 4294901760
  %167 = vmatpush.msra.mxu0 %v166
  %v168 = vand.u32 %v35, 4294901760
  %169 = vmatmul.f32.gmra.mxu0 %v168
  %v170 = vpop.f32.mrf.mxu0
  %v171 = vadd.f32 %v144, %v170
  %172 = vdwg.mxu0
  %173 = vmatpush.msra.mxu0 0.0
  %174 = vmatpush.msra.mxu0 0.0
  %175 = vmatpush.msra.mxu0 0.0
  %176 = vmatpush.msra.mxu0 0.0
  %177 = vmatpush.msra.mxu0 0.0
  %178 = vmatpush.msra.mxu0 0.0
  %179 = vmatpush.msra.mxu0 0.0
  %180 = vmatpush.msra.mxu0 0.0
  %181 = vmatpush.msra.mxu0 0.0
  %182 = vmatpush.msra.mxu0 0.0
  %183 = vmatpush.msra.mxu0 0.0
  %184 = vmatpush.msra.mxu0 0.0
  %185 = vmatpush.msra.mxu0 0.0
  %186 = vmatpush.msra.mxu0 0.0
  %v187 = vand.u32 %v28, 4294901760
  %188 = vmatpush.msra.mxu0 %v187
  %v189 = vand.u32 %v27, 4294901760
  %190 = vmatpush.msra.mxu0 %v189
  %v191 = vand.u32 %v35, 4294901760
  %192 = vmatmul.f32.gmra.mxu0 %v191
  %v193 = vpop.f32.mrf.mxu0
  %v194 = vadd.f32 %v171, %v193
  %195 = vdwg.mxu0
  %v196 = vmax.f32 %v194, 0.0
  %v197 = vld [vmem:[%s3] sm:$0xff]
  %v198 = vld [vmem:[%s3 + $0x8] sm:$0xff]
  %v199 = vld [vmem:[%s3 + $0x10] sm:$0xff]
  %v200 = vld [vmem:[%s3 + $0x18] sm:$0xff]
  %v201 = vld [vmem:[%s4] sm:$0x1]
  %v203 = vperm.slane %v201, 0
  %vm205 = vcmask 261120
  %v207 = vsel %vm205, %v196, 0
  %209 = vmatpush.msra.mxu0 0.0
  %210 = vmatpush.msra.mxu0 0.0
  %211 = vmatpush.msra.mxu0 0.0
  %212 = vmatpush.msra.mxu0 0.0
  %213 = vmatpush.msra.mxu0 0.0
  %214 = vmatpush.msra.mxu0 0.0
  %215 = vmatpush.msra.mxu0 0.0
  %216 = vmatpush.msra.mxu0 0.0
  %217 = vmatpush.msra.mxu0 0.0
  %218 = vmatpush.msra.mxu0 0.0
  %219 = vmatpush.msra.mxu0 0.0
  %220 = vmatpush.msra.mxu0 0.0
  %v221 = vand.u32 %v200, 4294901760
  %222 = vmatpush.msra.mxu0 %v221
  %v223 = vand.u32 %v199, 4294901760
  %224 = vmatpush.msra.mxu0 %v223
  %v225 = vand.u32 %v198, 4294901760
  %226 = vmatpush.msra.mxu0 %v225
  %v227 = vand.u32 %v197, 4294901760
  %228 = vmatpush.msra.mxu0 %v227
  %v229 = vand.u32 %v207, 4294901760
  %v230 = vsub.f32 %v207, %v229
  %v231 = vand.u32 %v230, 4294901760
  %v232 = vsub.f32 %v230, %v231
  %v233 = vand.u32 %v232, 4294901760
  %234 = vmatmul.f32.gmra.mxu0 %v233
  %v235 = vpop.f32.mrf.mxu0
  %v236 = vadd.f32 %v203, %v235
  %237 = vdwg.mxu0
  %238 = vmatpush.msra.mxu0 0.0
  %239 = vmatpush.msra.mxu0 0.0
  %240 = vmatpush.msra.mxu0 0.0
  %241 = vmatpush.msra.mxu0 0.0
  %242 = vmatpush.msra.mxu0 0.0
  %243 = vmatpush.msra.mxu0 0.0
  %244 = vmatpush.msra.mxu0 0.0
  %245 = vmatpush.msra.mxu0 0.0
  %246 = vmatpush.msra.mxu0 0.0
  %247 = vmatpush.msra.mxu0 0.0
  %248 = vmatpush.msra.mxu0 0.0
  %249 = vmatpush.msra.mxu0 0.0
  %v250 = vand.u32 %v200, 4294901760
  %v251 = vsub.f32 %v200, %v250
  %v252 = vand.u32 %v251, 4294901760
  %v253 = vsub.f32 %v251, %v252
  %v254 = vand.u32 %v253, 4294901760
  %255 = vmatpush.msra.mxu0 %v254
  %v256 = vand.u32 %v199, 4294901760
  %v257 = vsub.f32 %v199, %v256
  %v258 = vand.u32 %v257, 4294901760
  %v259 = vsub.f32 %v257, %v258
  %v260 = vand.u32 %v259, 4294901760
  %261 = vmatpush.msra.mxu0 %v260
  %v262 = vand.u32 %v198, 4294901760
  %v263 = vsub.f32 %v198, %v262
  %v264 = vand.u32 %v263, 4294901760
  %v265 = vsub.f32 %v263, %v264
  %v266 = vand.u32 %v265, 4294901760
  %267 = vmatpush.msra.mxu0 %v266
  %v268 = vand.u32 %v197, 4294901760
  %v269 = vsub.f32 %v197, %v268
  %v270 = vand.u32 %v269, 4294901760
  %v271 = vsub.f32 %v269, %v270
  %v272 = vand.u32 %v271, 4294901760
  %273 = vmatpush.msra.mxu0 %v272
  %v274 = vand.u32 %v207, 4294901760
  %275 = vmatmul.f32.gmra.mxu0 %v274
  %v276 = vpop.f32.mrf.mxu0
  %v277 = vadd.f32 %v236, %v276
  %278 = vdwg.mxu0
  %279 = vmatpush.msra.mxu0 0.0
  %280 = vmatpush.msra.mxu0 0.0
  %281 = vmatpush.msra.mxu0 0.0
  %282 = vmatpush.msra.mxu0 0.0
  %283 = vmatpush.msra.mxu0 0.0
  %284 = vmatpush.msra.mxu0 0.0
  %285 = vmatpush.msra.mxu0 0.0
  %286 = vmatpush.msra.mxu0 0.0
  %287 = vmatpush.msra.mxu0 0.0
  %288 = vmatpush.msra.mxu0 0.0
  %289 = vmatpush.msra.mxu0 0.0
  %290 = vmatpush.msra.mxu0 0.0
  %v291 = vand.u32 %v200, 4294901760
  %v292 = vsub.f32 %v200, %v291
  %293 = vmatpush.msra.mxu0 %v292
  %v294 = vand.u32 %v199, 4294901760
  %v295 = vsub.f32 %v199, %v294
  %296 = vmatpush.msra.mxu0 %v295
  %v297 = vand.u32 %v198, 4294901760
  %v298 = vsub.f32 %v198, %v297
  %299 = vmatpush.msra.mxu0 %v298
  %v300 = vand.u32 %v197, 4294901760
  %v301 = vsub.f32 %v197, %v300
  %302 = vmatpush.msra.mxu0 %v301
  %v303 = vand.u32 %v207, 4294901760
  %v304 = vsub.f32 %v207, %v303
  %305 = vmatmul.f32.gmra.mxu0 %v304
  %v306 = vpop.f32.mrf.mxu0
  %v307 = vadd.f32 %v277, %v306
  %308 = vdwg.mxu0
  %309 = vmatpush.msra.mxu0 0.0
  %310 = vmatpush.msra.mxu0 0.0
  %311 = vmatpush.msra.mxu0 0.0
  %312 = vmatpush.msra.mxu0 0.0
  %313 = vmatpush.msra.mxu0 0.0
  %314 = vmatpush.msra.mxu0 0.0
  %315 = vmatpush.msra.mxu0 0.0
  %316 = vmatpush.msra.mxu0 0.0
  %317 = vmatpush.msra.mxu0 0.0
  %318 = vmatpush.msra.mxu0 0.0
  %319 = vmatpush.msra.mxu0 0.0
  %320 = vmatpush.msra.mxu0 0.0
  %v321 = vand.u32 %v200, 4294901760
  %322 = vmatpush.msra.mxu0 %v321
  %v323 = vand.u32 %v199, 4294901760
  %324 = vmatpush.msra.mxu0 %v323
  %v325 = vand.u32 %v198, 4294901760
  %326 = vmatpush.msra.mxu0 %v325
  %v327 = vand.u32 %v197, 4294901760
  %328 = vmatpush.msra.mxu0 %v327
  %v329 = vand.u32 %v207, 4294901760
  %v330 = vsub.f32 %v207, %v329
  %v331 = vand.u32 %v330, 4294901760
  %332 = vmatmul.f32.gmra.mxu0 %v331
  %v333 = vpop.f32.mrf.mxu0
  %v334 = vadd.f32 %v307, %v333
  %335 = vdwg.mxu0
  %336 = vmatpush.msra.mxu0 0.0
  %337 = vmatpush.msra.mxu0 0.0
  %338 = vmatpush.msra.mxu0 0.0
  %339 = vmatpush.msra.mxu0 0.0
  %340 = vmatpush.msra.mxu0 0.0
  %341 = vmatpush.msra.mxu0 0.0
  %342 = vmatpush.msra.mxu0 0.0
  %343 = vmatpush.msra.mxu0 0.0
  %344 = vmatpush.msra.mxu0 0.0
  %345 = vmatpush.msra.mxu0 0.0
  %346 = vmatpush.msra.mxu0 0.0
  %347 = vmatpush.msra.mxu0 0.0
  %v348 = vand.u32 %v200, 4294901760
  %v349 = vsub.f32 %v200, %v348
  %v350 = vand.u32 %v349, 4294901760
  %351 = vmatpush.msra.mxu0 %v350
  %v352 = vand.u32 %v199, 4294901760
  %v353 = vsub.f32 %v199, %v352
  %v354 = vand.u32 %v353, 4294901760
  %355 = vmatpush.msra.mxu0 %v354
  %v356 = vand.u32 %v198, 4294901760
  %v357 = vsub.f32 %v198, %v356
  %v358 = vand.u32 %v357, 4294901760
  %359 = vmatpush.msra.mxu0 %v358
  %v360 = vand.u32 %v197, 4294901760
  %v361 = vsub.f32 %v197, %v360
  %v362 = vand.u32 %v361, 4294901760
  %363 = vmatpush.msra.mxu0 %v362
  %v364 = vand.u32 %v207, 4294901760
  %365 = vmatmul.f32.gmra.mxu0 %v364
  %v366 = vpop.f32.mrf.mxu0
  %v367 = vadd.f32 %v334, %v366
  %368 = vdwg.mxu0
  %369 = vmatpush.msra.mxu0 0.0
  %370 = vmatpush.msra.mxu0 0.0
  %371 = vmatpush.msra.mxu0 0.0
  %372 = vmatpush.msra.mxu0 0.0
  %373 = vmatpush.msra.mxu0 0.0
  %374 = vmatpush.msra.mxu0 0.0
  %375 = vmatpush.msra.mxu0 0.0
  %376 = vmatpush.msra.mxu0 0.0
  %377 = vmatpush.msra.mxu0 0.0
  %378 = vmatpush.msra.mxu0 0.0
  %379 = vmatpush.msra.mxu0 0.0
  %380 = vmatpush.msra.mxu0 0.0
  %v381 = vand.u32 %v200, 4294901760
  %382 = vmatpush.msra.mxu0 %v381
  %v383 = vand.u32 %v199, 4294901760
  %384 = vmatpush.msra.mxu0 %v383
  %v385 = vand.u32 %v198, 4294901760
  %386 = vmatpush.msra.mxu0 %v385
  %v387 = vand.u32 %v197, 4294901760
  %388 = vmatpush.msra.mxu0 %v387
  %v389 = vand.u32 %v207, 4294901760
  %390 = vmatmul.f32.gmra.mxu0 %v389
  %v391 = vpop.f32.mrf.mxu0
  %v392 = vadd.f32 %v367, %v391
  %393 = vdwg.mxu0
  %v394 = vmax.f32 %v392, 0.0
  %v395 = vld [vmem:[%s5] sm:$0xff]
  %v396 = vld [vmem:[%s5 + $0x8] sm:$0xff]
  %v397 = vld [vmem:[%s5 + $0x10] sm:$0xff]
  %v398 = vld [vmem:[%s5 + $0x18] sm:$0xff]
  %v399 = vld [vmem:[%s6] sm:$0x1]
  %v401 = vperm.slane %v399, 0
  %v404 = vsel %vm205, %v394, 0
  %406 = vmatpush.msra.mxu0 0.0
  %407 = vmatpush.msra.mxu0 0.0
  %408 = vmatpush.msra.mxu0 0.0
  %409 = vmatpush.msra.mxu0 0.0
  %410 = vmatpush.msra.mxu0 0.0
  %411 = vmatpush.msra.mxu0 0.0
  %412 = vmatpush.msra.mxu0 0.0
  %413 = vmatpush.msra.mxu0 0.0
  %414 = vmatpush.msra.mxu0 0.0
  %415 = vmatpush.msra.mxu0 0.0
  %416 = vmatpush.msra.mxu0 0.0
  %417 = vmatpush.msra.mxu0 0.0
  %v418 = vand.u32 %v398, 4294901760
  %419 = vmatpush.msra.mxu0 %v418
  %v420 = vand.u32 %v397, 4294901760
  %421 = vmatpush.msra.mxu0 %v420
  %v422 = vand.u32 %v396, 4294901760
  %423 = vmatpush.msra.mxu0 %v422
  %v424 = vand.u32 %v395, 4294901760
  %425 = vmatpush.msra.mxu0 %v424
  %v426 = vand.u32 %v404, 4294901760
  %v427 = vsub.f32 %v404, %v426
  %v428 = vand.u32 %v427, 4294901760
  %v429 = vsub.f32 %v427, %v428
  %v430 = vand.u32 %v429, 4294901760
  %431 = vmatmul.f32.gmra.mxu0 %v430
  %v432 = vpop.f32.mrf.mxu0
  %v433 = vadd.f32 %v401, %v432
  %434 = vdwg.mxu0
  %435 = vmatpush.msra.mxu0 0.0
  %436 = vmatpush.msra.mxu0 0.0
  %437 = vmatpush.msra.mxu0 0.0
  %438 = vmatpush.msra.mxu0 0.0
  %439 = vmatpush.msra.mxu0 0.0
  %440 = vmatpush.msra.mxu0 0.0
  %441 = vmatpush.msra.mxu0 0.0
  %442 = vmatpush.msra.mxu0 0.0
  %443 = vmatpush.msra.mxu0 0.0
  %444 = vmatpush.msra.mxu0 0.0
  %445 = vmatpush.msra.mxu0 0.0
  %446 = vmatpush.msra.mxu0 0.0
  %v447 = vand.u32 %v398, 4294901760
  %v448 = vsub.f32 %v398, %v447
  %v449 = vand.u32 %v448, 4294901760
  %v450 = vsub.f32 %v448, %v449
  %v451 = vand.u32 %v450, 4294901760
  %452 = vmatpush.msra.mxu0 %v451
  %v453 = vand.u32 %v397, 4294901760
  %v454 = vsub.f32 %v397, %v453
  %v455 = vand.u32 %v454, 4294901760
  %v456 = vsub.f32 %v454, %v455
  %v457 = vand.u32 %v456, 4294901760
  %458 = vmatpush.msra.mxu0 %v457
  %v459 = vand.u32 %v396, 4294901760
  %v460 = vsub.f32 %v396, %v459
  %v461 = vand.u32 %v460, 4294901760
  %v462 = vsub.f32 %v460, %v461
  %v463 = vand.u32 %v462, 4294901760
  %464 = vmatpush.msra.mxu0 %v463
  %v465 = vand.u32 %v395, 4294901760
  %v466 = vsub.f32 %v395, %v465
  %v467 = vand.u32 %v466, 4294901760
  %v468 = vsub.f32 %v466, %v467
  %v469 = vand.u32 %v468, 4294901760
  %470 = vmatpush.msra.mxu0 %v469
  %v471 = vand.u32 %v404, 4294901760
  %472 = vmatmul.f32.gmra.mxu0 %v471
  %v473 = vpop.f32.mrf.mxu0
  %v474 = vadd.f32 %v433, %v473
  %475 = vdwg.mxu0
  %476 = vmatpush.msra.mxu0 0.0
  %477 = vmatpush.msra.mxu0 0.0
  %478 = vmatpush.msra.mxu0 0.0
  %479 = vmatpush.msra.mxu0 0.0
  %480 = vmatpush.msra.mxu0 0.0
  %481 = vmatpush.msra.mxu0 0.0
  %482 = vmatpush.msra.mxu0 0.0
  %483 = vmatpush.msra.mxu0 0.0
  %484 = vmatpush.msra.mxu0 0.0
  %485 = vmatpush.msra.mxu0 0.0
  %486 = vmatpush.msra.mxu0 0.0
  %487 = vmatpush.msra.mxu0 0.0
  %v488 = vand.u32 %v398, 4294901760
  %v489 = vsub.f32 %v398, %v488
  %490 = vmatpush.msra.mxu0 %v489
  %v491 = vand.u32 %v397, 4294901760
  %v492 = vsub.f32 %v397, %v491
  %493 = vmatpush.msra.mxu0 %v492
  %v494 = vand.u32 %v396, 4294901760
  %v495 = vsub.f32 %v396, %v494
  %496 = vmatpush.msra.mxu0 %v495
  %v497 = vand.u32 %v395, 4294901760
  %v498 = vsub.f32 %v395, %v497
  %499 = vmatpush.msra.mxu0 %v498
  %v500 = vand.u32 %v404, 4294901760
  %v501 = vsub.f32 %v404, %v500
  %502 = vmatmul.f32.gmra.mxu0 %v501
  %v503 = vpop.f32.mrf.mxu0
  %v504 = vadd.f32 %v474, %v503
  %505 = vdwg.mxu0
  %506 = vmatpush.msra.mxu0 0.0
  %507 = vmatpush.msra.mxu0 0.0
  %508 = vmatpush.msra.mxu0 0.0
  %509 = vmatpush.msra.mxu0 0.0
  %510 = vmatpush.msra.mxu0 0.0
  %511 = vmatpush.msra.mxu0 0.0
  %512 = vmatpush.msra.mxu0 0.0
  %513 = vmatpush.msra.mxu0 0.0
  %514 = vmatpush.msra.mxu0 0.0
  %515 = vmatpush.msra.mxu0 0.0
  %516 = vmatpush.msra.mxu0 0.0
  %517 = vmatpush.msra.mxu0 0.0
  %v518 = vand.u32 %v398, 4294901760
  %519 = vmatpush.msra.mxu0 %v518
  %v520 = vand.u32 %v397, 4294901760
  %521 = vmatpush.msra.mxu0 %v520
  %v522 = vand.u32 %v396, 4294901760
  %523 = vmatpush.msra.mxu0 %v522
  %v524 = vand.u32 %v395, 4294901760
  %525 = vmatpush.msra.mxu0 %v524
  %v526 = vand.u32 %v404, 4294901760
  %v527 = vsub.f32 %v404, %v526
  %v528 = vand.u32 %v527, 4294901760
  %529 = vmatmul.f32.gmra.mxu0 %v528
  %v530 = vpop.f32.mrf.mxu0
  %v531 = vadd.f32 %v504, %v530
  %532 = vdwg.mxu0
  %533 = vmatpush.msra.mxu0 0.0
  %534 = vmatpush.msra.mxu0 0.0
  %535 = vmatpush.msra.mxu0 0.0
  %536 = vmatpush.msra.mxu0 0.0
  %537 = vmatpush.msra.mxu0 0.0
  %538 = vmatpush.msra.mxu0 0.0
  %539 = vmatpush.msra.mxu0 0.0
  %540 = vmatpush.msra.mxu0 0.0
  %541 = vmatpush.msra.mxu0 0.0
  %542 = vmatpush.msra.mxu0 0.0
  %543 = vmatpush.msra.mxu0 0.0
  %544 = vmatpush.msra.mxu0 0.0
  %v545 = vand.u32 %v398, 4294901760
  %v546 = vsub.f32 %v398, %v545
  %v547 = vand.u32 %v546, 4294901760
  %548 = vmatpush.msra.mxu0 %v547
  %v549 = vand.u32 %v397, 4294901760
  %v550 = vsub.f32 %v397, %v549
  %v551 = vand.u32 %v550, 4294901760
  %552 = vmatpush.msra.mxu0 %v551
  %v553 = vand.u32 %v396, 4294901760
  %v554 = vsub.f32 %v396, %v553
  %v555 = vand.u32 %v554, 4294901760
  %556 = vmatpush.msra.mxu0 %v555
  %v557 = vand.u32 %v395, 4294901760
  %v558 = vsub.f32 %v395, %v557
  %v559 = vand.u32 %v558, 4294901760
  %560 = vmatpush.msra.mxu0 %v559
  %v561 = vand.u32 %v404, 4294901760
  %562 = vmatmul.f32.gmra.mxu0 %v561
  %v563 = vpop.f32.mrf.mxu0
  %v564 = vadd.f32 %v531, %v563
  %565 = vdwg.mxu0
  %566 = vmatpush.msra.mxu0 0.0
  %567 = vmatpush.msra.mxu0 0.0
  %568 = vmatpush.msra.mxu0 0.0
  %569 = vmatpush.msra.mxu0 0.0
  %570 = vmatpush.msra.mxu0 0.0
  %571 = vmatpush.msra.mxu0 0.0
  %572 = vmatpush.msra.mxu0 0.0
  %573 = vmatpush.msra.mxu0 0.0
  %574 = vmatpush.msra.mxu0 0.0
  %575 = vmatpush.msra.mxu0 0.0
  %576 = vmatpush.msra.mxu0 0.0
  %577 = vmatpush.msra.mxu0 0.0
  %v578 = vand.u32 %v398, 4294901760
  %579 = vmatpush.msra.mxu0 %v578
  %v580 = vand.u32 %v397, 4294901760
  %581 = vmatpush.msra.mxu0 %v580
  %v582 = vand.u32 %v396, 4294901760
  %583 = vmatpush.msra.mxu0 %v582
  %v584 = vand.u32 %v395, 4294901760
  %585 = vmatpush.msra.mxu0 %v584
  %v586 = vand.u32 %v404, 4294901760
  %587 = vmatmul.f32.gmra.mxu0 %v586
  %v588 = vpop.f32.mrf.mxu0
  %v589 = vadd.f32 %v564, %v588
  %590 = vdwg.mxu0
  %vm591 = vcmask 64512
  %v592 = vsel %vm591, %v589, -inf
  %593 = vmax.xlane.f32.xlu0 %v592
  %v594 = vpop.xlane.xlu0 %593
  %v595 = vsub.f32 %v589, %v594
  %v596 = vmul.f32 %v595, 1.442695
  %v597 = vpow.pop %v596
  %v598 = vsel %vm591, %v597, 0.0
  %599 = vadd.xlane.f32.xlu0 %v598
  %v600 = vpop.xlane.xlu0 %599
  %v601 = vlog2.pop %v600
  %v602 = vmul.f32 %v601, 0.6931472
  %v603 = vsub.f32 %v595, %v602
  %604 = vst.msk [vmem:[%s7] sm:$0xff] %vm591, %v603
  // Predicated region
  $region30: #{categorical_mlp_policy_forward.1} parent=0 // pred_check
    _
  $region31: #{categorical_mlp_policy_forward.1} parent=0 // pred_check_branch
    %606 = sbr.rel (0) target = $region33
  $region32: #{categorical_mlp_policy_forward.1} parent=0 // pred_region
    _
  $region33: #{categorical_mlp_policy_forward.1} parent=0 // pred_fallthru
    _
  // Predicated region
  $region34: #{categorical_mlp_policy_forward.1} parent=0 // pred_check
    _
  $region35: #{categorical_mlp_policy_forward.1} parent=0 // pred_check_branch
    %608 = sbr.rel (0) target = $region37
  $region36: #{categorical_mlp_policy_forward.1} parent=0 // pred_region
    _
  $region37: #{categorical_mlp_policy_forward.1} parent=0 // pred_fallthru
    _

</llo_original>
